<compile_context>
chip_gen: v5e
topology: v5e:2x2
jax: 0.10.0
libtpu: 0.0.40
codegen_flags: <defaults>
</compile_context>

<pallas_src>
import jax
import jax.numpy as jnp
from jax.experimental import pallas as pl
from jax.experimental.pallas import tpu as pltpu

# ----------------------- module hyper-parameters ---------------------------
INPUT_DIM = 16
OUTPUT_DIM = 8
NUM_LAYERS = 2          # number of hidden layers
SIZE = 32               # hidden width
BATCH = 32              # small demo batch (multiple of 8 -> no row padding)
BATCH_TILE = 512        # rows per grid step for large batches
# activation = ReLU, output_activation = None (identity)

SUBLANE = 8


def _round_up(n, m):
    return ((n + m - 1) // m) * m


# ------------------------------ kernel -------------------------------------
def mlp_kernel(*refs):
    """refs = (x, w0, b0, w1, b1, ..., w_last, b_last, out).

    x, w*  : bf16 (MXU inputs), real (unpadded) feature widths
    b*     : f32  [1, dout]
    out    : f32  [TB, output_dim]
    """
    x_ref = refs[0]
    out_ref = refs[-1]
    param_refs = refs[1:-1]
    n_layers = len(param_refs) // 2

    h = x_ref[...]                                      # bf16 [TB, in_dim]
    for li in range(n_layers):
        w = param_refs[2 * li][...]                     # bf16 [din, dout]
        b = param_refs[2 * li + 1][...]                 # f32  [1, dout]
        acc = jnp.dot(h, w, preferred_element_type=jnp.float32) + b
        if li < n_layers - 1:
            # hidden activation (ReLU) on the f32 accumulator, then one
            # downcast so the next MXU op gets bf16 operands.
            h = jnp.maximum(acc, 0.0).astype(jnp.bfloat16)
        else:
            # output_activation is None -> identity; store f32 directly.
            out_ref[...] = acc


# --------------------------- param preparation -----------------------------
def prepare_params(params):
    """One-time cast/reshape (hoisted out of the per-call forward path)."""
    return tuple(
        (w.astype(jnp.bfloat16), b.reshape(1, -1).astype(jnp.float32))
        for w, b in params
    )


# ------------------------------ wrapper ------------------------------------
def mlp_forward(x, prepared, *, batch_tile=BATCH_TILE):
    """x: [batch, input_dim] f32; prepared: output of prepare_params."""
    batch, in_dim = x.shape
    out_dim = prepared[-1][0].shape[1]

    # Batch tiling: one tile for small batches, 512-row tiles for large ones.
    TB = min(batch_tile, _round_up(batch, SUBLANE))
    Bp = _round_up(batch, TB)

    x_b = x.astype(jnp.bfloat16)
    if Bp != batch:
        # TODO(synk): a pl.when row-validity mask would skip the padded tail
        # compute; for this tiny MLP the padded rows are cheaper than a branch.
        x_b = jnp.zeros((Bp, in_dim), jnp.bfloat16).at[:batch].set(x_b)

    flat = []
    in_specs = [pl.BlockSpec((TB, in_dim), lambda i: (i, 0))]   # streams per tile
    for w, b in prepared:
        flat += [w, b]
        in_specs += [pl.BlockSpec(w.shape, lambda i: (0, 0)),   # VMEM-resident
                     pl.BlockSpec(b.shape, lambda i: (0, 0))]   # VMEM-resident

    flops = sum(2 * Bp * w.shape[0] * w.shape[1] for w, _ in prepared)
    bytes_accessed = (x_b.size * 2
                      + sum(w.size * 2 + b.size * 4 for w, b in prepared)
                      + Bp * out_dim * 4)

    out_p = pl.pallas_call(
        mlp_kernel,
        out_shape=jax.ShapeDtypeStruct((Bp, out_dim), jnp.float32),
        grid=(Bp // TB,),
        in_specs=in_specs,
        out_specs=pl.BlockSpec((TB, out_dim), lambda i: (i, 0)),
        compiler_params=pltpu.CompilerParams(
            dimension_semantics=("parallel",)),    # splits tiles across v7x TCs
        cost_estimate=pl.CostEstimate(
            flops=flops, transcendentals=0, bytes_accessed=bytes_accessed),
    )(x_b, *flat)

    return out_p[:batch] if Bp != batch else out_p


# ------------------------ init + references --------------------------------
def init_params(key):
    """Deterministic init mimicking torch.nn.Linear default (uniform)."""
    dims = [INPUT_DIM] + [SIZE] * NUM_LAYERS + [OUTPUT_DIM]
    params = []
    for din, dout in zip(dims[:-1], dims[1:]):
        key, kw, kb = jax.random.split(key, 3)
        bound = 1.0 / jnp.sqrt(din)
        w = jax.random.uniform(kw, (din, dout), jnp.float32, -bound, bound)
        b = jax.random.uniform(kb, (1, dout), jnp.float32, -bound, bound)
        params.append((w, b))
    return params


def reference_forward_f32(x, params):
    h = x
    for i, (w, b) in enumerate(params):
        h = h @ w + b.reshape(1, -1)
        if i < len(params) - 1:
            h = jnp.maximum(h, 0.0)
    return h


def reference_forward_bf16(x, prepared):
    """Plain-JAX mirror of the kernel's mixed precision (bf16 MXU, f32 acc)."""
    h = x.astype(jnp.bfloat16)
    for i, (w, b) in enumerate(prepared):
        acc = jnp.dot(h, w, preferred_element_type=jnp.float32) + b
        if i < len(prepared) - 1:
            h = jnp.maximum(acc, 0.0).astype(jnp.bfloat16)
        else:
            h = acc
    return h


# TODO(synk): training-time utilities of the torch module (L1_loss / L2_loss
# properties, predict() numpy-conversion decorators) are not part of the
# forward pass and are intentionally not implemented as kernels.

if __name__ == "__main__":
    key = jax.random.PRNGKey(0)
    key, kx = jax.random.split(key)
    x = jax.random.normal(kx, (BATCH, INPUT_DIM), jnp.float32)
    params = init_params(key)
    prepared = prepare_params(params)          # hoisted cast, done once

    fwd = jax.jit(mlp_forward)
    out = jax.block_until_ready(fwd(x, prepared))

    assert out.shape == (BATCH, OUTPUT_DIM), out.shape

    # Tight check against a reference that mirrors the kernel's precision.
    ref_bf16 = reference_forward_bf16(x, prepared)
    assert jnp.allclose(out, ref_bf16, atol=5e-3, rtol=5e-3), (
        "mismatch vs bf16-mirror reference")

    # Loose semantic check against the full-f32 reference (bf16 rounding only).
    ref_f32 = reference_forward_f32(x, params)
    assert jnp.allclose(out, ref_f32, atol=1e-1, rtol=1e-1), (
        "mismatch vs f32 reference")

    print("KERNEL_OK")
</pallas_src>

<mosaic_0001>
module attributes {stable_mosaic.version = 11 : i64} {
  func.func @mlp_kernel(%arg0: i32, %arg1: memref<32x16xbf16, #tpu.memory_space<vmem>>, %arg2: memref<16x32xbf16, #tpu.memory_space<vmem>>, %arg3: memref<1x32xf32, #tpu.memory_space<vmem>>, %arg4: memref<32x32xbf16, #tpu.memory_space<vmem>>, %arg5: memref<1x32xf32, #tpu.memory_space<vmem>>, %arg6: memref<32x8xbf16, #tpu.memory_space<vmem>>, %arg7: memref<1x8xf32, #tpu.memory_space<vmem>>, %arg8: memref<32x8xf32, #tpu.memory_space<vmem>>) attributes {dimension_semantics = [#tpu.dimension_semantics<parallel>], iteration_bounds = array<i64: 1>, scalar_prefetch = 0 : i64, scratch_operands = 0 : i64, tpu.core_type = #tpu.core_type<tc>, window_params = [{transform_indices = @transform_0, window_bounds = array<i64: 32, 16>}, {pipeline_mode = #tpu.pipeline_mode<synchronous>, transform_indices = @transform_1, window_bounds = array<i64: 16, 32>}, {pipeline_mode = #tpu.pipeline_mode<synchronous>, transform_indices = @transform_2, window_bounds = array<i64: 1, 32>}, {pipeline_mode = #tpu.pipeline_mode<synchronous>, transform_indices = @transform_3, window_bounds = array<i64: 32, 32>}, {pipeline_mode = #tpu.pipeline_mode<synchronous>, transform_indices = @transform_4, window_bounds = array<i64: 1, 32>}, {pipeline_mode = #tpu.pipeline_mode<synchronous>, transform_indices = @transform_5, window_bounds = array<i64: 32, 8>}, {pipeline_mode = #tpu.pipeline_mode<synchronous>, transform_indices = @transform_6, window_bounds = array<i64: 1, 8>}, {transform_indices = @transform_7, window_bounds = array<i64: 32, 8>}]} {
    %c0 = arith.constant 0 : index
    %c0_0 = arith.constant 0 : index
    %0 = vector.load %arg1[%c0, %c0_0] : memref<32x16xbf16, #tpu.memory_space<vmem>>, vector<32x16xbf16>
    %c0_1 = arith.constant 0 : index
    %c0_2 = arith.constant 0 : index
    %1 = vector.load %arg2[%c0_1, %c0_2] : memref<16x32xbf16, #tpu.memory_space<vmem>>, vector<16x32xbf16>
    %c0_3 = arith.constant 0 : index
    %c0_4 = arith.constant 0 : index
    %2 = vector.load %arg3[%c0_3, %c0_4] : memref<1x32xf32, #tpu.memory_space<vmem>>, vector<1x32xf32>
    %cst = arith.constant dense<0.000000e+00> : vector<32x32xf32>
    %3 = tpu.matmul %0, %1, %cst {dimension_numbers = #tpu.dot_dimension_numbers<[1], [0], [0], [1], [0, 0, 1, 1], [], []>} : vector<32x16xbf16>, vector<16x32xbf16>, vector<32x32xf32> -> vector<32x32xf32>
    %4 = vector.broadcast %2 : vector<1x32xf32> to vector<32x32xf32>
    %5 = arith.addf %3, %4 : vector<32x32xf32>
    %cst_5 = arith.constant 0.000000e+00 : f32
    %6 = vector.broadcast %cst_5 : f32 to vector<32x32xf32>
    %7 = arith.maximumf %5, %6 : vector<32x32xf32>
    %8 = arith.truncf %7 : vector<32x32xf32> to vector<32x32xbf16>
    %c0_6 = arith.constant 0 : index
    %c0_7 = arith.constant 0 : index
    %9 = vector.load %arg4[%c0_6, %c0_7] : memref<32x32xbf16, #tpu.memory_space<vmem>>, vector<32x32xbf16>
    %c0_8 = arith.constant 0 : index
    %c0_9 = arith.constant 0 : index
    %10 = vector.load %arg5[%c0_8, %c0_9] : memref<1x32xf32, #tpu.memory_space<vmem>>, vector<1x32xf32>
    %cst_10 = arith.constant dense<0.000000e+00> : vector<32x32xf32>
    %11 = tpu.matmul %8, %9, %cst_10 {dimension_numbers = #tpu.dot_dimension_numbers<[1], [0], [0], [1], [0, 0, 1, 1], [], []>} : vector<32x32xbf16>, vector<32x32xbf16>, vector<32x32xf32> -> vector<32x32xf32>
    %12 = vector.broadcast %10 : vector<1x32xf32> to vector<32x32xf32>
    %13 = arith.addf %11, %12 : vector<32x32xf32>
    %cst_11 = arith.constant 0.000000e+00 : f32
    %14 = vector.broadcast %cst_11 : f32 to vector<32x32xf32>
    %15 = arith.maximumf %13, %14 : vector<32x32xf32>
    %16 = arith.truncf %15 : vector<32x32xf32> to vector<32x32xbf16>
    %c0_12 = arith.constant 0 : index
    %c0_13 = arith.constant 0 : index
    %17 = vector.load %arg6[%c0_12, %c0_13] : memref<32x8xbf16, #tpu.memory_space<vmem>>, vector<32x8xbf16>
    %c0_14 = arith.constant 0 : index
    %c0_15 = arith.constant 0 : index
    %18 = vector.load %arg7[%c0_14, %c0_15] : memref<1x8xf32, #tpu.memory_space<vmem>>, vector<1x8xf32>
    %cst_16 = arith.constant dense<0.000000e+00> : vector<32x8xf32>
    %19 = tpu.matmul %16, %17, %cst_16 {dimension_numbers = #tpu.dot_dimension_numbers<[1], [0], [0], [1], [0, 0, 1, 1], [], []>} : vector<32x32xbf16>, vector<32x8xbf16>, vector<32x8xf32> -> vector<32x8xf32>
    %20 = vector.broadcast %18 : vector<1x8xf32> to vector<32x8xf32>
    %21 = arith.addf %19, %20 : vector<32x8xf32>
    %c0_17 = arith.constant 0 : index
    %c0_18 = arith.constant 0 : index
    %22 = vector.load %arg8[%c0_17, %c0_18] : memref<32x8xf32, #tpu.memory_space<vmem>>, vector<32x8xf32>
    tpu.vector_store %arg8[%c0_17, %c0_18], %21 {strides = array<i32>} : memref<32x8xf32, #tpu.memory_space<vmem>>, vector<32x8xf32>,
    return
  }
  func.func @transform_0(%arg0: i32) -> (i32, i32) {
    %c0_i32 = arith.constant 0 : i32
    %c0_i32_0 = arith.constant 0 : i32
    return %arg0, %c0_i32 : i32, i32
  }
  func.func @transform_1(%arg0: i32) -> (i32, i32) {
    %c0_i32 = arith.constant 0 : i32
    %c0_i32_0 = arith.constant 0 : i32
    %c0_i32_1 = arith.constant 0 : i32
    return %c0_i32, %c0_i32_0 : i32, i32
  }
  func.func @transform_2(%arg0: i32) -> (i32, i32) {
    %c0_i32 = arith.constant 0 : i32
    %c0_i32_0 = arith.constant 0 : i32
    %c0_i32_1 = arith.constant 0 : i32
    return %c0_i32, %c0_i32_0 : i32, i32
  }
  func.func @transform_3(%arg0: i32) -> (i32, i32) {
    %c0_i32 = arith.constant 0 : i32
    %c0_i32_0 = arith.constant 0 : i32
    %c0_i32_1 = arith.constant 0 : i32
    return %c0_i32, %c0_i32_0 : i32, i32
  }
  func.func @transform_4(%arg0: i32) -> (i32, i32) {
    %c0_i32 = arith.constant 0 : i32
    %c0_i32_0 = arith.constant 0 : i32
    %c0_i32_1 = arith.constant 0 : i32
    return %c0_i32, %c0_i32_0 : i32, i32
  }
  func.func @transform_5(%arg0: i32) -> (i32, i32) {
    %c0_i32 = arith.constant 0 : i32
    %c0_i32_0 = arith.constant 0 : i32
    %c0_i32_1 = arith.constant 0 : i32
    return %c0_i32, %c0_i32_0 : i32, i32
  }
  func.func @transform_6(%arg0: i32) -> (i32, i32) {
    %c0_i32 = arith.constant 0 : i32
    %c0_i32_0 = arith.constant 0 : i32
    %c0_i32_1 = arith.constant 0 : i32
    return %c0_i32, %c0_i32_0 : i32, i32
  }
  func.func @transform_7(%arg0: i32) -> (i32, i32) {
    %c0_i32 = arith.constant 0 : i32
    %c0_i32_0 = arith.constant 0 : i32
    return %arg0, %c0_i32 : i32, i32
  }
}

</mosaic_0001>

<llo_original>
// kernel: mlp_forward.1
$region0: #{mlp_forward.1}
  #allocation0 [shape = 'u32[]', space=smem, size = 0x4, offset = 0x4, fixed_abs, tag = 'smem constant byte address 0x4 - core index']
  #allocation1 [shape = 'u32[72,128]{1,0:T(1,128)}', space=vmem, size = 0x9000, scoped, tag = 'internal scratch']
  %s0 = inlined_call_operand.vmem [shape: bf16[32,16], index: 0, kind: input, shape index: {}]
  %s1 = inlined_call_operand.vmem [shape: bf16[16,32], index: 1, kind: input, shape index: {}]
  %s2 = inlined_call_operand.vmem [shape: f32[1,32], index: 2, kind: input, shape index: {}]
  %s3 = inlined_call_operand.vmem [shape: bf16[32,32], index: 3, kind: input, shape index: {}]
  %s4 = inlined_call_operand.vmem [shape: f32[1,32], index: 4, kind: input, shape index: {}]
  %s5 = inlined_call_operand.vmem [shape: bf16[32,8], index: 5, kind: input, shape index: {}]
  %s6 = inlined_call_operand.vmem [shape: f32[1,8], index: 6, kind: input, shape index: {}]
  %s7 = inlined_call_operand.vmem [shape: f32[32,8], index: 7, kind: output, shape index: {}]
  %s8 = sld [smem:[#allocation0]]
  $region38: #{mlp_forward.1} parent=0
    _
  %s10 = ssub.s32 1, %s8
  %s11 = scalar_select 0, %s10, %s8
  // Predicated region
  $region2: #{mlp_forward.1} parent=0 // pred_check
    _
  $region3: #{mlp_forward.1} parent=0 // pred_check_branch
    %13 = sbr.rel (0) target = $region5
  $region4: #{mlp_forward.1} parent=0 // pred_region
    _
  $region5: #{mlp_forward.1} parent=0 // pred_fallthru
    _
  // Predicated region
  $region6: #{mlp_forward.1} parent=0 // pred_check
    _
  $region7: #{mlp_forward.1} parent=0 // pred_check_branch
    %15 = sbr.rel (0) target = $region9
  $region8: #{mlp_forward.1} parent=0 // pred_region
    _
  $region9: #{mlp_forward.1} parent=0 // pred_fallthru
    _
  // Predicated region
  $region10: #{mlp_forward.1} parent=0 // pred_check
    _
  $region11: #{mlp_forward.1} parent=0 // pred_check_branch
    %17 = sbr.rel (0) target = $region13
  $region12: #{mlp_forward.1} parent=0 // pred_region
    _
  $region13: #{mlp_forward.1} parent=0 // pred_fallthru
    _
  // Predicated region
  $region14: #{mlp_forward.1} parent=0 // pred_check
    _
  $region15: #{mlp_forward.1} parent=0 // pred_check_branch
    %19 = sbr.rel (0) target = $region17
  $region16: #{mlp_forward.1} parent=0 // pred_region
    _
  $region17: #{mlp_forward.1} parent=0 // pred_fallthru
    _
  // Predicated region
  $region18: #{mlp_forward.1} parent=0 // pred_check
    _
  $region19: #{mlp_forward.1} parent=0 // pred_check_branch
    %21 = sbr.rel (0) target = $region21
  $region20: #{mlp_forward.1} parent=0 // pred_region
    _
  $region21: #{mlp_forward.1} parent=0 // pred_fallthru
    _
  // Predicated region
  $region22: #{mlp_forward.1} parent=0 // pred_check
    _
  $region23: #{mlp_forward.1} parent=0 // pred_check_branch
    %23 = sbr.rel (0) target = $region25
  $region24: #{mlp_forward.1} parent=0 // pred_region
    _
  $region25: #{mlp_forward.1} parent=0 // pred_fallthru
    _
  // Predicated region
  $region26: #{mlp_forward.1} parent=0 // pred_check
    _
  $region27: #{mlp_forward.1} parent=0 // pred_check_branch
    %25 = sbr.rel (0) target = $region29
  $region28: #{mlp_forward.1} parent=0 // pred_region
    _
  $region29: #{mlp_forward.1} parent=0 // pred_fallthru
    _
  %v27 = vld [vmem:[%s0] sm:$0xf]
  %v28 = vld [vmem:[%s0 + $0x4] sm:$0xf]
  %v29 = vld [vmem:[%s0 + $0x8] sm:$0xf]
  %v30 = vld [vmem:[%s0 + $0xc] sm:$0xf]
  %v31 = vld [vmem:[%s1] sm:$0xf]
  %v32 = vld [vmem:[%s1 + $0x4] sm:$0xf]
  %v33 = vld [vmem:[%s2] sm:$0x1]
  %v35 = vperm.slane %v33, 0
  %v41 = vunpack.c.l.b16 %v27
  %v42 = vunpack.c.l.b16 %v28
  %v43 = vunpack.c.l.b16 %v29
  %v44 = vunpack.c.l.b16 %v30
  %v45 = vpack.c.b16 %v42, %v41
  %v46 = vpack.c.b16 %v44, %v43
  %v49 = vunpack.c.l.b16 %v31
  %v50 = vunpack.c.l.b16 %v32
  %v51 = vpack.c.b16 %v50, %v49
  %vm53 = vcmask 130048
  %v55 = vsel %vm53, %v45, 0
  %v58 = vsel %vm53, %v46, 0
  %60 = vmatpush.bf16.msra.mxu0 0
  %61 = vmatpush.bf16.msra.mxu0 0
  %62 = vmatpush.bf16.msra.mxu0 0
  %63 = vmatpush.bf16.msra.mxu0 0
  %64 = vmatpush.bf16.msra.mxu0 0
  %65 = vmatpush.bf16.msra.mxu0 0
  %66 = vmatpush.bf16.msra.mxu0 0
  %67 = vmatpush.bf16.msra.mxu0 %v51
  %68 = vmatmul.bf16.gmra.mxu0 %v55
  %v69 = vpop.f32.mrf.mxu0
  %v70 = vadd.f32 %v35, %v69
  %v71 = vpop.f32.mrf.mxu0
  %v72 = vadd.f32 %v35, %v71
  %73 = vmatmul.bf16.gmra.mxu0 %v58
  %v74 = vpop.f32.mrf.mxu0
  %v75 = vadd.f32 %v35, %v74
  %v76 = vpop.f32.mrf.mxu0
  %v77 = vadd.f32 %v35, %v76
  %78 = vdwg.mxu0
  %v79 = vmax.f32 %v70, 0.0
  %v80 = vmax.f32 %v72, 0.0
  %v81 = vmax.f32 %v75, 0.0
  %v82 = vmax.f32 %v77, 0.0
  %v83 = vpack.c.bf16 %v80, %v79
  %v84 = vpack.c.bf16 %v82, %v81
  %v85 = vld [vmem:[%s3] sm:$0xf]
  %v86 = vld [vmem:[%s3 + $0x4] sm:$0xf]
  %v87 = vld [vmem:[%s3 + $0x8] sm:$0xf]
  %v88 = vld [vmem:[%s3 + $0xc] sm:$0xf]
  %v89 = vld [vmem:[%s4] sm:$0x1]
  %v91 = vperm.slane %v89, 0
  %v97 = vunpack.c.l.b16 %v85
  %v98 = vunpack.c.l.b16 %v86
  %v99 = vunpack.c.l.b16 %v87
  %v100 = vunpack.c.l.b16 %v88
  %v101 = vpack.c.b16 %v98, %v97
  %v102 = vpack.c.b16 %v100, %v99
  %vm105 = vcmask 261120
  %v107 = vsel %vm105, %v83, 0
  %v110 = vsel %vm105, %v84, 0
  %112 = vmatpush.bf16.msra.mxu0 0
  %113 = vmatpush.bf16.msra.mxu0 0
  %114 = vmatpush.bf16.msra.mxu0 0
  %115 = vmatpush.bf16.msra.mxu0 0
  %116 = vmatpush.bf16.msra.mxu0 0
  %117 = vmatpush.bf16.msra.mxu0 0
  %118 = vmatpush.bf16.msra.mxu0 %v102
  %119 = vmatpush.bf16.msra.mxu0 %v101
  %120 = vmatmul.bf16.gmra.mxu0 %v107
  %v121 = vpop.f32.mrf.mxu0
  %v122 = vadd.f32 %v91, %v121
  %v123 = vpop.f32.mrf.mxu0
  %v124 = vadd.f32 %v91, %v123
  %125 = vmatmul.bf16.gmra.mxu0 %v110
  %v126 = vpop.f32.mrf.mxu0
  %v127 = vadd.f32 %v91, %v126
  %v128 = vpop.f32.mrf.mxu0
  %v129 = vadd.f32 %v91, %v128
  %130 = vdwg.mxu0
  %v131 = vmax.f32 %v122, 0.0
  %v132 = vmax.f32 %v124, 0.0
  %v133 = vmax.f32 %v127, 0.0
  %v134 = vmax.f32 %v129, 0.0
  %v135 = vpack.c.bf16 %v132, %v131
  %v136 = vpack.c.bf16 %v134, %v133
  %v137 = vld [vmem:[%s5] sm:$0xf]
  %v138 = vld [vmem:[%s5 + $0x4] sm:$0xf]
  %v139 = vld [vmem:[%s5 + $0x8] sm:$0xf]
  %v140 = vld [vmem:[%s5 + $0xc] sm:$0xf]
  %v141 = vld [vmem:[%s6] sm:$0x1]
  %v143 = vperm.slane %v141, 0
  %v149 = vunpack.c.l.b16 %v137
  %v150 = vunpack.c.l.b16 %v138
  %v151 = vunpack.c.l.b16 %v139
  %v152 = vunpack.c.l.b16 %v140
  %v153 = vpack.c.b16 %v150, %v149
  %v154 = vpack.c.b16 %v152, %v151
  %v158 = vsel %vm105, %v135, 0
  %v161 = vsel %vm105, %v136, 0
  %163 = vmatpush.bf16.msra.mxu0 0
  %164 = vmatpush.bf16.msra.mxu0 0
  %165 = vmatpush.bf16.msra.mxu0 0
  %166 = vmatpush.bf16.msra.mxu0 0
  %167 = vmatpush.bf16.msra.mxu0 0
  %168 = vmatpush.bf16.msra.mxu0 0
  %169 = vmatpush.bf16.msra.mxu0 %v154
  %170 = vmatpush.bf16.msra.mxu0 %v153
  %171 = vmatmul.bf16.gmra.mxu0 %v158
  %v172 = vpop.f32.mrf.mxu0
  %v173 = vadd.f32 %v143, %v172
  %v174 = vpop.f32.mrf.mxu0
  %v175 = vadd.f32 %v143, %v174
  %176 = vmatmul.bf16.gmra.mxu0 %v161
  %v177 = vpop.f32.mrf.mxu0
  %v178 = vadd.f32 %v143, %v177
  %v179 = vpop.f32.mrf.mxu0
  %v180 = vadd.f32 %v143, %v179
  %181 = vdwg.mxu0
  %vm182 = vcmask 64512
  %183 = vst.msk [vmem:[%s7] sm:$0xff] %vm182, %v173
  %184 = vst.msk [vmem:[%s7 + $0x8] sm:$0xff] %vm182, %v175
  %185 = vst.msk [vmem:[%s7 + $0x10] sm:$0xff] %vm182, %v178
  %186 = vst.msk [vmem:[%s7 + $0x18] sm:$0xff] %vm182, %v180
  // Predicated region
  $region30: #{mlp_forward.1} parent=0 // pred_check
    _
  $region31: #{mlp_forward.1} parent=0 // pred_check_branch
    %188 = sbr.rel (0) target = $region33
  $region32: #{mlp_forward.1} parent=0 // pred_region
    _
  $region33: #{mlp_forward.1} parent=0 // pred_fallthru
    _
  // Predicated region
  $region34: #{mlp_forward.1} parent=0 // pred_check
    _
  $region35: #{mlp_forward.1} parent=0 // pred_check_branch
    %190 = sbr.rel (0) target = $region37
  $region36: #{mlp_forward.1} parent=0 // pred_region
    _
  $region37: #{mlp_forward.1} parent=0 // pred_fallthru
    _

</llo_original>
